<compile_context>
chip_gen: v6e
topology: v6e:2x2x1
jax: 0.10.0
libtpu: 0.0.40
codegen_flags: <defaults>
</compile_context>

<pallas_src>
import functools

import jax
import jax.numpy as jnp
from jax.experimental import pallas as pl
from jax.experimental.pallas import tpu as pltpu


def _pool_kernel(ph_ref, x_ref, o_ref, *, factor, rows_out):
    """Pool one channel tile.

    x_ref : (C_TILE*W, H)       — C_TILE spatial planes stacked along the sublane axis.
    ph_ref: (H, out_h)          — column-averaging matrix, entries 1/factor**2.
    o_ref : (C_TILE*out_w, out_h)

    Row r = c*W + w of x_ref contributes to output row rho = c*out_w + ow with
    w = ow*factor + k, i.e. source rows are rho*factor + k — a uniform sublane
    stride of `factor` even across channel boundaries (since W % factor == 0).
    """
    # W-direction pooling: `factor` sublane-strided loads + VPU adds, f32 accumulation.
    acc = x_ref[pl.ds(0, rows_out, stride=factor), :].astype(jnp.float32)
    for k in range(1, factor):
        acc = acc + x_ref[pl.ds(k, rows_out, stride=factor), :].astype(jnp.float32)
    # H-direction pooling: one big-M MXU matmul; 1/factor**2 in ph also normalizes
    # the W-direction sum above.
    out = jnp.dot(acc, ph_ref[...], preferred_element_type=jnp.float32)
    o_ref[...] = out.astype(o_ref.dtype)


def _avg_matrix_t(in_dim: int, factor: int, dtype) -> jnp.ndarray:
    """(in_dim, out_dim) pre-transposed block-averaging matrix with 1/factor**2 weights."""
    out_dim = in_dim // factor
    rows = (jnp.arange(in_dim, dtype=jnp.int32) // factor)[:, None]
    cols = jnp.arange(out_dim, dtype=jnp.int32)[None, :]
    return jnp.where(rows == cols, 1.0 / (factor * factor), 0.0).astype(dtype)


def _pick_c_tile(n, w, h, out_w, out_h, itemsize, budget_bytes):
    """Channels per grid step, sized from an approximate live-VMEM budget."""
    per_c = (2 * w * h * itemsize              # double-buffered input rows
             + out_w * h * 4                   # f32 row-pooled intermediate
             + 2 * out_w * out_h * max(itemsize, 4))  # double-buffered output rows
    c_tile = min(n, max(1, budget_bytes // per_c))
    if c_tile < n:
        # Keep block sublane extents (C_TILE*W, C_TILE*out_w) multiples of 8.
        c_tile = max(8, (c_tile // 8) * 8)
        c_tile = min(c_tile, n)
    return int(c_tile)


def naive_downsampler(tensor: jnp.ndarray, factor: int = 4):
    """JAX/Pallas equivalent of NaiveDownsampler.forward. Input is NCHW."""
    if factor is None:
        factor = 4
    b, c, w, h = tensor.shape
    # TODO(synk): uneven adaptive windows (W or H not divisible by factor) not implemented.
    assert w % factor == 0 and h % factor == 0, (
        "Pallas kernel implements the uniform-window case (dims divisible by factor)")
    out_w, out_h = w // factor, h // factor
    n = b * c
    dtype = tensor.dtype

    c_tile = _pick_c_tile(n, w, h, out_w, out_h, tensor.dtype.itemsize,
                          budget_bytes=24 * 1024 * 1024)
    rows_in = c_tile * w
    rows_out = c_tile * out_w
    num_tiles = pl.cdiv(n, c_tile)

    x2 = tensor.reshape(n * w, h)                 # free row-major reshape
    ph = _avg_matrix_t(h, factor, jnp.float32)    # (h, out_h)

    pooled2 = pl.pallas_call(
        functools.partial(_pool_kernel, factor=factor, rows_out=rows_out),
        out_shape=jax.ShapeDtypeStruct((n * out_w, out_h), dtype),
        grid=(num_tiles,),
        in_specs=[
            pl.BlockSpec((h, out_h), lambda i: (0, 0)),       # resident averaging matrix
            pl.BlockSpec((rows_in, h), lambda i: (i, 0)),     # C_TILE channel planes
        ],
        out_specs=pl.BlockSpec((rows_out, out_h), lambda i: (i, 0)),
        compiler_params=pltpu.CompilerParams(
            dimension_semantics=("parallel",),        # v7x: both TCs split the channel grid
            vmem_limit_bytes=48 * 1024 * 1024,        # > 16/32 MiB defaults, < v7x 64 MiB physical
        ),
    )(ph, x2)

    # TODO(synk): output last dim (out_h) stays < 128 lanes (lane-dense store would need a
    # risky in-kernel sublane->lane reshape); acceptable since output traffic is factor**2
    # smaller than input traffic.
    return {"generated": pooled2.reshape(b, c, out_w, out_h)}


if __name__ == "__main__":
    key = jax.random.PRNGKey(0)
    B, C, W, H = 2, 4, 16, 16
    factor = 4
    x = jax.random.normal(key, (B, C, W, H), dtype=jnp.float32)

    out = naive_downsampler(x, factor=factor)["generated"]
    out = jax.block_until_ready(out)

    # Reference: uniform-window average pooling == adaptive_avg_pool2d for divisible dims.
    ref = x.reshape(B, C, W // factor, factor, H // factor, factor).mean(axis=(3, 5))
    assert out.shape == (B, C, W // factor, H // factor)
    assert jnp.allclose(out, ref, atol=1e-5, rtol=1e-5)

    print("KERNEL_OK")
</pallas_src>

<mosaic_0001>
module attributes {stable_mosaic.version = 11 : i64} {
  func.func @_pool_kernel(%arg0: i32, %arg1: memref<16x4xf32, #tpu.memory_space<vmem>>, %arg2: memref<128x16xf32, #tpu.memory_space<vmem>>, %arg3: memref<32x4xf32, #tpu.memory_space<vmem>>) attributes {dimension_semantics = [#tpu.dimension_semantics<parallel>], iteration_bounds = array<i64: 1>, scalar_prefetch = 0 : i64, scratch_operands = 0 : i64, tpu.core_type = #tpu.core_type<tc>, window_params = [{pipeline_mode = #tpu.pipeline_mode<synchronous>, transform_indices = @transform_0, window_bounds = array<i64: 16, 4>}, {transform_indices = @transform_1, window_bounds = array<i64: 128, 16>}, {transform_indices = @transform_2, window_bounds = array<i64: 32, 4>}]} {
    %c0 = arith.constant 0 : index
    %c0_0 = arith.constant 0 : index
    %0 = tpu.strided_load %arg2[%c0, %c0_0] {strides = array<i32: 4, 1>} : memref<128x16xf32, #tpu.memory_space<vmem>>, vector<32x16xf32>
    %c1 = arith.constant 1 : index
    %c0_1 = arith.constant 0 : index
    %1 = tpu.strided_load %arg2[%c1, %c0_1] {strides = array<i32: 4, 1>} : memref<128x16xf32, #tpu.memory_space<vmem>>, vector<32x16xf32>
    %2 = arith.addf %0, %1 : vector<32x16xf32>
    %c2 = arith.constant 2 : index
    %c0_2 = arith.constant 0 : index
    %3 = tpu.strided_load %arg2[%c2, %c0_2] {strides = array<i32: 4, 1>} : memref<128x16xf32, #tpu.memory_space<vmem>>, vector<32x16xf32>
    %4 = arith.addf %2, %3 : vector<32x16xf32>
    %c3 = arith.constant 3 : index
    %c0_3 = arith.constant 0 : index
    %5 = tpu.strided_load %arg2[%c3, %c0_3] {strides = array<i32: 4, 1>} : memref<128x16xf32, #tpu.memory_space<vmem>>, vector<32x16xf32>
    %6 = arith.addf %4, %5 : vector<32x16xf32>
    %c0_4 = arith.constant 0 : index
    %c0_5 = arith.constant 0 : index
    %7 = vector.load %arg1[%c0_4, %c0_5] : memref<16x4xf32, #tpu.memory_space<vmem>>, vector<16x4xf32>
    %cst = arith.constant dense<0.000000e+00> : vector<32x4xf32>
    %8 = tpu.matmul %6, %7, %cst {dimension_numbers = #tpu.dot_dimension_numbers<[1], [0], [0], [1], [0, 0, 1, 1], [], []>} : vector<32x16xf32>, vector<16x4xf32>, vector<32x4xf32> -> vector<32x4xf32>
    %c0_6 = arith.constant 0 : index
    %c0_7 = arith.constant 0 : index
    %9 = vector.load %arg3[%c0_6, %c0_7] : memref<32x4xf32, #tpu.memory_space<vmem>>, vector<32x4xf32>
    tpu.vector_store %arg3[%c0_6, %c0_7], %8 {strides = array<i32>} : memref<32x4xf32, #tpu.memory_space<vmem>>, vector<32x4xf32>,
    return
  }
  func.func @transform_0(%arg0: i32) -> (i32, i32) {
    %c0_i32 = arith.constant 0 : i32
    %c0_i32_0 = arith.constant 0 : i32
    %c0_i32_1 = arith.constant 0 : i32
    return %c0_i32, %c0_i32_0 : i32, i32
  }
  func.func @transform_1(%arg0: i32) -> (i32, i32) {
    %c0_i32 = arith.constant 0 : i32
    %c0_i32_0 = arith.constant 0 : i32
    return %arg0, %c0_i32 : i32, i32
  }
  func.func @transform_2(%arg0: i32) -> (i32, i32) {
    %c0_i32 = arith.constant 0 : i32
    %c0_i32_0 = arith.constant 0 : i32
    return %arg0, %c0_i32 : i32, i32
  }
}

</mosaic_0001>

<llo_original>
// kernel: tpu_custom_call.1
$region0: #{tpu_custom_call.1}
  #allocation0 [shape = 'u32[]', space=smem, size = 0x4, offset = 0x4, fixed_abs, tag = 'smem constant byte address 0x4 - core index']
  #allocation1 [shape = 'u32[144,128]{1,0:T(1,128)}', space=vmem, size = 0x12000, scoped, tag = 'internal scratch']
  %s0 = inlined_call_operand.vmem [shape: f32[16,4], index: 0, kind: input, shape index: {}]
  %s1 = inlined_call_operand.vmem [shape: f32[128,16], index: 1, kind: input, shape index: {}]
  %s2 = inlined_call_operand.vmem [shape: f32[32,4], index: 2, kind: output, shape index: {}]
  %s3 = sld [smem:[#allocation0]]
  $region18: #{tpu_custom_call.1} parent=0
    _
  %s5 = ssub.s32 1, %s3
  %s6 = scalar_select 0, %s5, %s3
  // Predicated region
  $region2: #{tpu_custom_call.1} parent=0 // pred_check
    _
  $region3: #{tpu_custom_call.1} parent=0 // pred_check_branch
    %8 = sbr.rel (0) target = $region5
  $region4: #{tpu_custom_call.1} parent=0 // pred_region
    _
  $region5: #{tpu_custom_call.1} parent=0 // pred_fallthru
    _
  // Predicated region
  $region6: #{tpu_custom_call.1} parent=0 // pred_check
    _
  $region7: #{tpu_custom_call.1} parent=0 // pred_check_branch
    %10 = sbr.rel (0) target = $region9
  $region8: #{tpu_custom_call.1} parent=0 // pred_region
    _
  $region9: #{tpu_custom_call.1} parent=0 // pred_fallthru
    _
  %v11 = vld [vmem:[%s1] ss:$4 sm:$0xff]
  %s12 = scalar_lea.vmem %s1, 32
  %v13 = vld [vmem:[%s12] ss:$4 sm:$0xff]
  %s14 = scalar_lea.vmem %s1, 64
  %v15 = vld [vmem:[%s14] ss:$4 sm:$0xff]
  %s16 = scalar_lea.vmem %s1, 96
  %v17 = vld [vmem:[%s16] ss:$4 sm:$0xff]
  %s18 = scalar_lea.vmem %s1, 1
  %v19 = vld [vmem:[%s18] ss:$4 sm:$0xff]
  %s20 = scalar_lea.vmem %s1, 33
  %v21 = vld [vmem:[%s20] ss:$4 sm:$0xff]
  %s22 = scalar_lea.vmem %s1, 65
  %v23 = vld [vmem:[%s22] ss:$4 sm:$0xff]
  %s24 = scalar_lea.vmem %s1, 97
  %v25 = vld [vmem:[%s24] ss:$4 sm:$0xff]
  %v26 = vadd.f32 %v11, %v19
  %v27 = vadd.f32 %v13, %v21
  %v28 = vadd.f32 %v15, %v23
  %v29 = vadd.f32 %v17, %v25
  %s30 = scalar_lea.vmem %s1, 2
  %v31 = vld [vmem:[%s30] ss:$4 sm:$0xff]
  %s32 = scalar_lea.vmem %s1, 34
  %v33 = vld [vmem:[%s32] ss:$4 sm:$0xff]
  %s34 = scalar_lea.vmem %s1, 66
  %v35 = vld [vmem:[%s34] ss:$4 sm:$0xff]
  %s36 = scalar_lea.vmem %s1, 98
  %v37 = vld [vmem:[%s36] ss:$4 sm:$0xff]
  %v38 = vadd.f32 %v26, %v31
  %v39 = vadd.f32 %v27, %v33
  %v40 = vadd.f32 %v28, %v35
  %v41 = vadd.f32 %v29, %v37
  %s42 = scalar_lea.vmem %s1, 3
  %v43 = vld [vmem:[%s42] ss:$4 sm:$0xff]
  %s44 = scalar_lea.vmem %s1, 35
  %v45 = vld [vmem:[%s44] ss:$4 sm:$0xff]
  %s46 = scalar_lea.vmem %s1, 67
  %v47 = vld [vmem:[%s46] ss:$4 sm:$0xff]
  %s48 = scalar_lea.vmem %s1, 99
  %v49 = vld [vmem:[%s48] ss:$4 sm:$0xff]
  %v50 = vadd.f32 %v38, %v43
  %v51 = vadd.f32 %v39, %v45
  %v52 = vadd.f32 %v40, %v47
  %v53 = vadd.f32 %v41, %v49
  %v54 = vld [vmem:[%s0] sm:$0xff]
  %v55 = vld [vmem:[%s0 + $0x8] sm:$0xff]
  %vm56 = vcmask 130048
  %v58 = vsel %vm56, %v50, 0
  %v61 = vsel %vm56, %v51, 0
  %v64 = vsel %vm56, %v52, 0
  %v67 = vsel %vm56, %v53, 0
  %69 = vmatprep.subr.mxu0 0.0
  %70 = vmatpush1.msra.mxu0 0.0
  %71 = vmatprep.subr.mxu0 0.0
  %72 = vmatpush1.msra.mxu0 0.0
  %73 = vmatprep.subr.mxu0 0.0
  %74 = vmatpush1.msra.mxu0 0.0
  %75 = vmatprep.subr.mxu0 0.0
  %76 = vmatpush1.msra.mxu0 0.0
  %77 = vmatprep.subr.mxu0 0.0
  %78 = vmatpush1.msra.mxu0 0.0
  %79 = vmatprep.subr.mxu0 0.0
  %80 = vmatpush1.msra.mxu0 0.0
  %81 = vmatprep.subr.mxu0 0.0
  %82 = vmatpush1.msra.mxu0 0.0
  %83 = vmatprep.subr.mxu0 0.0
  %84 = vmatpush1.msra.mxu0 0.0
  %85 = vmatprep.subr.mxu0 0.0
  %86 = vmatpush1.msra.mxu0 0.0
  %87 = vmatprep.subr.mxu0 0.0
  %88 = vmatpush1.msra.mxu0 0.0
  %89 = vmatprep.subr.mxu0 0.0
  %90 = vmatpush1.msra.mxu0 0.0
  %91 = vmatprep.subr.mxu0 0.0
  %92 = vmatpush1.msra.mxu0 0.0
  %93 = vmatprep.subr.mxu0 0.0
  %94 = vmatpush1.msra.mxu0 0.0
  %95 = vmatprep.subr.mxu0 0.0
  %96 = vmatpush1.msra.mxu0 0.0
  %97 = vmatprep.subr.mxu0 0.0
  %98 = vmatpush1.msra.mxu0 %v55
  %99 = vmatprep.subr.mxu0 0.0
  %100 = vmatpush1.msra.mxu0 %v54
  %101 = vmatprep.subr.mxu0 0.0
  %102 = vmatpush2.msra.mxu0 0.0
  %103 = vmatprep.subr.mxu0 0.0
  %104 = vmatpush2.msra.mxu0 0.0
  %105 = vmatprep.subr.mxu0 0.0
  %106 = vmatpush2.msra.mxu0 0.0
  %107 = vmatprep.subr.mxu0 0.0
  %108 = vmatpush2.msra.mxu0 0.0
  %109 = vmatprep.subr.mxu0 0.0
  %110 = vmatpush2.msra.mxu0 0.0
  %111 = vmatprep.subr.mxu0 0.0
  %112 = vmatpush2.msra.mxu0 0.0
  %113 = vmatprep.subr.mxu0 0.0
  %114 = vmatpush2.msra.mxu0 0.0
  %115 = vmatprep.subr.mxu0 0.0
  %116 = vmatpush2.msra.mxu0 0.0
  %117 = vmatprep.subr.mxu0 0.0
  %118 = vmatpush2.msra.mxu0 0.0
  %119 = vmatprep.subr.mxu0 0.0
  %120 = vmatpush2.msra.mxu0 0.0
  %121 = vmatprep.subr.mxu0 0.0
  %122 = vmatpush2.msra.mxu0 0.0
  %123 = vmatprep.subr.mxu0 0.0
  %124 = vmatpush2.msra.mxu0 0.0
  %125 = vmatprep.subr.mxu0 0.0
  %126 = vmatpush2.msra.mxu0 0.0
  %127 = vmatprep.subr.mxu0 0.0
  %128 = vmatpush2.msra.mxu0 0.0
  %129 = vmatprep.subr.mxu0 0.0
  %130 = vmatpush2.msra.mxu0 0.0
  %131 = vmatprep.subr.mxu0 0.0
  %132 = vmatpush2.msra.mxu0 0.0
  %133 = vmatprep.mubr.f32.mxu0 0.0
  %134 = vmatmul.mubr.f32.gmra.mxu0 %v58
  %v135 = vpop.f32.mrf.mxu0
  %v136 = vadd.f32 0.0, %v135
  %v137 = vpop.f32.mrf.mxu0
  %138 = vmatprep.mubr.f32.mxu0 0.0
  %139 = vmatmul.mubr.f32.gmra.mxu0 %v61
  %v140 = vpop.f32.mrf.mxu0
  %v141 = vadd.f32 0.0, %v140
  %v142 = vpop.f32.mrf.mxu0
  %143 = vmatprep.mubr.f32.mxu0 0.0
  %144 = vmatmul.mubr.f32.gmra.mxu0 %v64
  %v145 = vpop.f32.mrf.mxu0
  %v146 = vadd.f32 0.0, %v145
  %v147 = vpop.f32.mrf.mxu0
  %148 = vmatprep.mubr.f32.mxu0 0.0
  %149 = vmatmul.mubr.f32.gmra.mxu0 %v67
  %v150 = vpop.f32.mrf.mxu0
  %v151 = vadd.f32 0.0, %v150
  %v152 = vpop.f32.mrf.mxu0
  %153 = vdwg.mxu0
  %vm154 = vcmask 31744
  %155 = vst.msk [vmem:[%s2] sm:$0xff] %vm154, %v136
  %156 = vst.msk [vmem:[%s2 + $0x8] sm:$0xff] %vm154, %v141
  %157 = vst.msk [vmem:[%s2 + $0x10] sm:$0xff] %vm154, %v146
  %158 = vst.msk [vmem:[%s2 + $0x18] sm:$0xff] %vm154, %v151
  // Predicated region
  $region10: #{tpu_custom_call.1} parent=0 // pred_check
    _
  $region11: #{tpu_custom_call.1} parent=0 // pred_check_branch
    %160 = sbr.rel (0) target = $region13
  $region12: #{tpu_custom_call.1} parent=0 // pred_region
    _
  $region13: #{tpu_custom_call.1} parent=0 // pred_fallthru
    _
  // Predicated region
  $region14: #{tpu_custom_call.1} parent=0 // pred_check
    _
  $region15: #{tpu_custom_call.1} parent=0 // pred_check_branch
    %162 = sbr.rel (0) target = $region17
  $region16: #{tpu_custom_call.1} parent=0 // pred_region
    _
  $region17: #{tpu_custom_call.1} parent=0 // pred_fallthru
    _

</llo_original>
